<compile_context>
chip_gen: v5e
topology: v5e:2x2
jax: 0.10.0
libtpu: 0.0.40
codegen_flags: <defaults>
</compile_context>

<pallas_src>
import functools

import jax
import jax.numpy as jnp
from jax.experimental import pallas as pl
from jax.experimental.pallas import tpu as pltpu

LN_EPS = 1e-12      # config.layer_norm_eps (BERT default)
DENOM_EPS = 1e-9    # clamp for all-zero masks (semantic divergence: PyTorch would emit NaN/Inf)


def _head_kernel(hidden_ref, masks_ref, invc_ref, w_ref, p_ref, out_ref,
                 p1_ref, acc_ref):
    # hidden_ref: (TB, TS, H)   one S-tile of the encoder output
    # masks_ref : (TB, 2, TS)   stacked [part2_mask, part3_mask] for this S-tile
    # invc_ref  : (TB, 2, 1)    precomputed f32 1/count (clamped) per row/mask
    # w_ref     : (H, H)        Linear weight pre-transposed: y = x @ W  (hidden dtype)
    # p_ref     : (3, H)        rows [bias, ln_gamma, ln_beta], f32
    # out_ref   : (TB, 3, H)    rows [part1, part2, part3]  (f32, resident across S)
    # p1_ref    : (TB, H)       f32 scratch holding the CLS projection result
    # acc_ref   : (TB, 2, H)    f32 scratch, masked-sum accumulator over S tiles
    s = pl.program_id(1)
    last_s = pl.num_programs(1) - 1

    hidden = hidden_ref[...]                              # (TB, TS, H)
    hidden_f32 = hidden.astype(jnp.float32)
    masks = masks_ref[...].astype(jnp.float32)            # (TB, 2, TS)

    @pl.when(s == 0)
    def _init():
        # CLS token lives in the first S tile: do Linear + LayerNorm now (MXU),
        # stash result; also zero the pooling accumulator.
        params = p_ref[...]                               # (3, H) f32
        cls = hidden[:, 0, :]                             # (TB, H)
        proj = jnp.dot(cls, w_ref[...],
                       preferred_element_type=jnp.float32)  # (TB, H) f32
        proj = proj + params[0:1, :]
        mean = jnp.mean(proj, axis=-1, keepdims=True)
        var = jnp.mean(jnp.square(proj - mean), axis=-1, keepdims=True)
        part1 = (proj - mean) * jax.lax.rsqrt(var + LN_EPS)
        p1_ref[...] = part1 * params[1:2, :] + params[2:3, :]
        acc_ref[...] = jnp.zeros_like(acc_ref)

    # Masked partial sums for this S tile: VPU multiply + sublane (XLU) reduce.
    m2 = masks[:, 0, :][:, :, None]                       # (TB, TS, 1)
    m3 = masks[:, 1, :][:, :, None]
    acc_ref[:, 0, :] += jnp.sum(hidden_f32 * m2, axis=1)  # (TB, H)
    acc_ref[:, 1, :] += jnp.sum(hidden_f32 * m3, axis=1)

    @pl.when(s == last_s)
    def _finalize():
        pooled = acc_ref[...] * invc_ref[...]             # (TB, 2, H) * (TB, 2, 1)
        # Lane-dense stores: each write is a full H-wide row.
        out_ref[:, 0, :] = p1_ref[...].astype(out_ref.dtype)
        out_ref[:, 1, :] = pooled[:, 0, :].astype(out_ref.dtype)
        out_ref[:, 2, :] = pooled[:, 1, :].astype(out_ref.dtype)


def _pick_s_tile(S, TB, H, itemsize, block_s=None, target_bytes=8 << 20):
    """Largest S tile that (a) divides S, (b) keeps the hidden block near
    `target_bytes`, and (c) satisfies the lane-dim constraint of the stacked
    masks block (TS % 128 == 0 or TS == S)."""
    if block_s is not None and S % block_s == 0 and (block_s == S or block_s % 128 == 0):
        return block_s
    if TB * S * H * itemsize <= target_bytes:
        return S
    cands = [ts for ts in (8192, 4096, 2048, 1024, 512, 256, 128)
             if ts < S and S % ts == 0]
    for ts in cands:                      # descending
        if TB * ts * H * itemsize <= target_bytes:
            return ts
    return cands[-1] if cands else S      # fall back to smallest divisor / full S


@functools.partial(jax.jit, static_argnames=("block_b", "block_s"))
def three_cat_pool_head(hidden_states, part2_mask, part3_mask,
                        w_proj, b_proj, ln_gamma, ln_beta,
                        *, block_b=8, block_s=None):
    """hidden_states: [B,S,H]; masks: [B,S]; w_proj: [H_out,H_in] (torch layout).

    Returns [B, 3H] float32 = concat([LayerNorm(Linear(cls)), mean2, mean3])."""
    B, S, H = hidden_states.shape
    dtype = hidden_states.dtype
    itemsize = jnp.dtype(dtype).itemsize

    # Batch tile: keep >=2 grid steps along the parallel axis whenever B > 1
    # (lets the grid shard across both v7x TensorCores); no padded copy of
    # hidden_states — the last batch block may be ragged, which is safe because
    # rows are independent and out-of-range output rows are masked on writeback.
    TB = max(1, min(block_b, pl.cdiv(B, 2))) if B > 1 else 1
    n_b = pl.cdiv(B, TB)

    # Sequence tile (divides S exactly, so the pooling accumulation never reads
    # undefined tail data along S).
    TS = _pick_s_tile(S, TB, H, itemsize, block_s)
    n_s = S // TS

    # Stacked masks (B, 2, S) in hidden dtype (0/1 exact in bf16 too).
    masks = jnp.stack([part2_mask, part3_mask], axis=1).astype(dtype)

    # Hoisted f32 denominators (clamped so all-zero-mask rows stay finite).
    counts = jnp.stack(
        [jnp.sum(part2_mask.astype(jnp.float32), axis=-1),
         jnp.sum(part3_mask.astype(jnp.float32), axis=-1)], axis=1)[:, :, None]
    inv_counts = 1.0 / jnp.maximum(counts, DENOM_EPS)                 # (B, 2, 1)

    # Projection / LayerNorm parameters (W^T in hidden dtype -> single native
    # MXU pass; LN params stay f32 for exact normalization math).
    w_t = jnp.transpose(w_proj).astype(dtype)                         # (H_in, H_out)
    params = jnp.stack([b_proj, ln_gamma, ln_beta], 0).astype(jnp.float32)  # (3, H)

    # VMEM budget from the actual (double-buffered) block footprint + headroom.
    footprint = (2 * (TB * TS * H * itemsize          # hidden block
                      + TB * 2 * TS * itemsize        # masks block
                      + TB * 2 * 4                    # inv_counts block
                      + H * H * itemsize              # W^T
                      + 3 * H * 4                     # params
                      + TB * 3 * H * 4)               # output block
                 + TB * 2 * H * 4 + TB * H * 4)       # scratches
    vmem_limit = int(min(max(footprint + (8 << 20), 16 << 20), 100 << 20))

    out = pl.pallas_call(
        _head_kernel,
        out_shape=jax.ShapeDtypeStruct((B, 3, H), jnp.float32),
        grid_spec=pltpu.PrefetchScalarGridSpec(
            num_scalar_prefetch=0,
            grid=(n_b, n_s),
            in_specs=[
                pl.BlockSpec((TB, TS, H), lambda b, s: (b, s, 0)),   # hidden tile
                pl.BlockSpec((TB, 2, TS), lambda b, s: (b, 0, s)),   # stacked masks tile
                pl.BlockSpec((TB, 2, 1), lambda b, s: (b, 0, 0)),    # inv counts
                pl.BlockSpec((H, H), lambda b, s: (0, 0)),           # W^T (invariant)
                pl.BlockSpec((3, H), lambda b, s: (0, 0)),           # bias/gamma/beta
            ],
            out_specs=pl.BlockSpec((TB, 3, H), lambda b, s: (b, 0, 0)),
            scratch_shapes=[
                pltpu.VMEM((TB, H), jnp.float32),      # part1 (CLS proj) scratch
                pltpu.VMEM((TB, 2, H), jnp.float32),   # pooling accumulator
            ],
        ),
        compiler_params=pltpu.CompilerParams(
            dimension_semantics=("parallel", "arbitrary"),
            vmem_limit_bytes=vmem_limit,
        ),
    )(hidden_states, masks, inv_counts, w_t, params)

    # (B, 3, H) is contiguous -> this reshape is a free view.
    return out.reshape(B, 3 * H)


def _reference(hidden, m2, m3, w, b, g, beta):
    hidden = hidden.astype(jnp.float32)
    cls = hidden[:, 0, :]
    proj = cls @ w.T + b
    mean = proj.mean(-1, keepdims=True)
    var = ((proj - mean) ** 2).mean(-1, keepdims=True)
    part1 = (proj - mean) / jnp.sqrt(var + LN_EPS) * g + beta
    part2 = (hidden * m2[:, :, None]).sum(1) / m2.sum(1, keepdims=True)
    part3 = (hidden * m3[:, :, None]).sum(1) / m3.sum(1, keepdims=True)
    return jnp.concatenate([part1, part2, part3], axis=1)


if __name__ == "__main__":
    key = jax.random.PRNGKey(0)
    k_h, k_m2, k_m3, k_w, k_b, k_g, k_beta = jax.random.split(key, 7)

    H = 32

    # deterministic "project" parameters (Linear(H, H) + LayerNorm(H))
    w_proj = jax.random.normal(k_w, (H, H), dtype=jnp.float32) * 0.05   # [out, in]
    b_proj = jax.random.normal(k_b, (H,), dtype=jnp.float32) * 0.01
    ln_gamma = jnp.ones((H,), jnp.float32) + 0.1 * jax.random.normal(k_g, (H,))
    ln_beta = 0.1 * jax.random.normal(k_beta, (H,), dtype=jnp.float32)

    # (B, S, block_s): covers multi-tile batch grid, ragged last batch block,
    # and a multi-step S accumulation path.
    cases = ((2, 8, None), (10, 8, None), (5, 256, 128))

    for case_idx, (B, S, bs) in enumerate(cases):
        kh, km2, km3 = jax.random.split(jax.random.fold_in(k_h, case_idx), 3)
        hidden = jax.random.normal(kh, (B, S, H), dtype=jnp.float32)

        # binary masks; force first token on so row sums are nonzero
        m2 = (jax.random.uniform(km2, (B, S)) < 0.7).astype(jnp.float32)
        m3 = (jax.random.uniform(km3, (B, S)) < 0.5).astype(jnp.float32)
        m2 = m2.at[:, 0].set(1.0)
        m3 = m3.at[:, 0].set(1.0)

        out = three_cat_pool_head(hidden, m2, m3, w_proj, b_proj,
                                  ln_gamma, ln_beta, block_b=8, block_s=bs)
        out = jax.block_until_ready(out)

        ref = _reference(hidden, m2, m3, w_proj, b_proj, ln_gamma, ln_beta)
        assert out.shape == (B, 3 * H)
        assert jnp.allclose(out, ref, atol=1e-4, rtol=1e-4), \
            f"mismatch vs reference (B={B}, S={S})"

    print("KERNEL_OK")
</pallas_src>

<mosaic_0001>
module attributes {stable_mosaic.version = 11 : i64} {
  func.func @_head_kernel(%arg0: i32, %arg1: i32, %arg2: memref<1x8x32xf32, #tpu.memory_space<vmem>>, %arg3: memref<1x2x8xf32, #tpu.memory_space<vmem>>, %arg4: memref<1x2x1xf32, #tpu.memory_space<vmem>>, %arg5: memref<32x32xf32, #tpu.memory_space<vmem>>, %arg6: memref<3x32xf32, #tpu.memory_space<vmem>>, %arg7: memref<1x3x32xf32, #tpu.memory_space<vmem>>, %arg8: memref<1x32xf32, #tpu.memory_space<vmem>>, %arg9: memref<1x2x32xf32, #tpu.memory_space<vmem>>) attributes {dimension_semantics = [#tpu.dimension_semantics<parallel>, #tpu.dimension_semantics<arbitrary>], iteration_bounds = array<i64: 2, 1>, scalar_prefetch = 0 : i64, scratch_operands = 2 : i64, tpu.core_type = #tpu.core_type<tc>, window_params = [{transform_indices = @transform_0, window_bounds = array<i64: 1, 8, 32>}, {transform_indices = @transform_1, window_bounds = array<i64: 1, 2, 8>}, {transform_indices = @transform_2, window_bounds = array<i64: 1, 2, 1>}, {pipeline_mode = #tpu.pipeline_mode<synchronous>, transform_indices = @transform_3, window_bounds = array<i64: 32, 32>}, {pipeline_mode = #tpu.pipeline_mode<synchronous>, transform_indices = @transform_4, window_bounds = array<i64: 3, 32>}, {transform_indices = @transform_5, window_bounds = array<i64: 1, 3, 32>}]} {
    %c0 = arith.constant 0 : index
    %c0_0 = arith.constant 0 : index
    %c0_1 = arith.constant 0 : index
    %0 = vector.load %arg2[%c0, %c0_0, %c0_1] : memref<1x8x32xf32, #tpu.memory_space<vmem>>, vector<1x8x32xf32>
    %c0_2 = arith.constant 0 : index
    %c0_3 = arith.constant 0 : index
    %c0_4 = arith.constant 0 : index
    %1 = vector.load %arg3[%c0_2, %c0_3, %c0_4] : memref<1x2x8xf32, #tpu.memory_space<vmem>>, vector<1x2x8xf32>
    %c0_i32 = arith.constant 0 : i32
    %2 = arith.cmpi eq, %arg1, %c0_i32 : i32
    %3 = arith.extui %2 : i1 to i32
    %c0_i32_5 = arith.constant 0 : i32
    %4 = arith.cmpi ne, %3, %c0_i32_5 : i32
    scf.if %4 {
      %c0_20 = arith.constant 0 : index
      %c0_21 = arith.constant 0 : index
      %32 = vector.load %arg6[%c0_20, %c0_21] : memref<3x32xf32, #tpu.memory_space<vmem>>, vector<3x32xf32>
      %33 = vector.extract_strided_slice %0 {offsets = [0, 0, 0], sizes = [1, 1, 32], strides = [1, 1, 1]} : vector<1x8x32xf32> to vector<1x1x32xf32>
      %34 = vector.shape_cast %33 : vector<1x1x32xf32> to vector<1x32xf32>
      %c0_22 = arith.constant 0 : index
      %c0_23 = arith.constant 0 : index
      %35 = vector.load %arg5[%c0_22, %c0_23] : memref<32x32xf32, #tpu.memory_space<vmem>>, vector<32x32xf32>
      %cst_24 = arith.constant dense<0.000000e+00> : vector<1x32xf32>
      %36 = tpu.matmul %34, %35, %cst_24 {dimension_numbers = #tpu.dot_dimension_numbers<[1], [0], [0], [1], [0, 0, 1, 1], [], []>} : vector<1x32xf32>, vector<32x32xf32>, vector<1x32xf32> -> vector<1x32xf32>
      %37 = vector.extract_strided_slice %32 {offsets = [0, 0], sizes = [1, 32], strides = [1, 1]} : vector<3x32xf32> to vector<1x32xf32>
      %38 = arith.addf %36, %37 : vector<1x32xf32>
      %cst_25 = arith.constant dense<0.000000e+00> : vector<1xf32>
      %39 = vector.multi_reduction <add>, %38, %cst_25 [1] : vector<1x32xf32> to vector<1xf32>
      %40 = vector.shape_cast %39 : vector<1xf32> to vector<1x1xf32>
      %cst_26 = arith.constant 3.200000e+01 : f32
      %41 = vector.broadcast %cst_26 : f32 to vector<1x1xf32>
      %42 = arith.divf %40, %41 : vector<1x1xf32>
      %43 = vector.broadcast %42 : vector<1x1xf32> to vector<1x32xf32>
      %44 = arith.subf %38, %43 : vector<1x32xf32>
      %45 = arith.mulf %44, %44 : vector<1x32xf32>
      %cst_27 = arith.constant dense<0.000000e+00> : vector<1xf32>
      %46 = vector.multi_reduction <add>, %45, %cst_27 [1] : vector<1x32xf32> to vector<1xf32>
      %47 = vector.shape_cast %46 : vector<1xf32> to vector<1x1xf32>
      %cst_28 = arith.constant 3.200000e+01 : f32
      %48 = vector.broadcast %cst_28 : f32 to vector<1x1xf32>
      %49 = arith.divf %47, %48 : vector<1x1xf32>
      %50 = vector.broadcast %42 : vector<1x1xf32> to vector<1x32xf32>
      %51 = arith.subf %38, %50 : vector<1x32xf32>
      %cst_29 = arith.constant 9.99999996E-13 : f32
      %52 = vector.broadcast %cst_29 : f32 to vector<1x1xf32>
      %53 = arith.addf %49, %52 : vector<1x1xf32>
      %54 = math.rsqrt %53 : vector<1x1xf32>
      %55 = vector.broadcast %54 : vector<1x1xf32> to vector<1x32xf32>
      %56 = arith.mulf %51, %55 : vector<1x32xf32>
      %57 = vector.extract_strided_slice %32 {offsets = [1, 0], sizes = [1, 32], strides = [1, 1]} : vector<3x32xf32> to vector<1x32xf32>
      %58 = arith.mulf %56, %57 : vector<1x32xf32>
      %59 = vector.extract_strided_slice %32 {offsets = [2, 0], sizes = [1, 32], strides = [1, 1]} : vector<3x32xf32> to vector<1x32xf32>
      %60 = arith.addf %58, %59 : vector<1x32xf32>
      %c0_30 = arith.constant 0 : index
      %c0_31 = arith.constant 0 : index
      %61 = vector.load %arg8[%c0_30, %c0_31] : memref<1x32xf32, #tpu.memory_space<vmem>>, vector<1x32xf32>
      tpu.vector_store %arg8[%c0_30, %c0_31], %60 {strides = array<i32>} : memref<1x32xf32, #tpu.memory_space<vmem>>, vector<1x32xf32>,
      %cst_32 = arith.constant 0.000000e+00 : f32
      %62 = vector.broadcast %cst_32 : f32 to vector<1x2x32xf32>
      %c0_33 = arith.constant 0 : index
      %c0_34 = arith.constant 0 : index
      %c0_35 = arith.constant 0 : index
      %63 = vector.load %arg9[%c0_33, %c0_34, %c0_35] : memref<1x2x32xf32, #tpu.memory_space<vmem>>, vector<1x2x32xf32>
      tpu.vector_store %arg9[%c0_33, %c0_34, %c0_35], %62 {strides = array<i32>} : memref<1x2x32xf32, #tpu.memory_space<vmem>>, vector<1x2x32xf32>,
    } else {
    }
    %5 = vector.extract_strided_slice %1 {offsets = [0, 0, 0], sizes = [1, 1, 8], strides = [1, 1, 1]} : vector<1x2x8xf32> to vector<1x1x8xf32>
    %6 = vector.shape_cast %5 : vector<1x1x8xf32> to vector<1x8xf32>
    %7 = vector.shape_cast %6 : vector<1x8xf32> to vector<1x8x1xf32>
    %8 = vector.extract_strided_slice %1 {offsets = [0, 1, 0], sizes = [1, 1, 8], strides = [1, 1, 1]} : vector<1x2x8xf32> to vector<1x1x8xf32>
    %9 = vector.shape_cast %8 : vector<1x1x8xf32> to vector<1x8xf32>
    %10 = vector.shape_cast %9 : vector<1x8xf32> to vector<1x8x1xf32>
    %c0_6 = arith.constant 0 : index
    %c0_7 = arith.constant 0 : index
    %c0_8 = arith.constant 0 : index
    %11 = vector.load %arg9[%c0_6, %c0_7, %c0_8] : memref<1x2x32xf32, #tpu.memory_space<vmem>>, vector<1x1x32xf32>
    %12 = vector.shape_cast %11 : vector<1x1x32xf32> to vector<1x32xf32>
    %13 = vector.broadcast %7 : vector<1x8x1xf32> to vector<1x8x32xf32>
    %14 = arith.mulf %0, %13 : vector<1x8x32xf32>
    %cst = arith.constant dense<0.000000e+00> : vector<1x32xf32>
    %15 = vector.multi_reduction <add>, %14, %cst [1] : vector<1x8x32xf32> to vector<1x32xf32>
    %16 = arith.addf %12, %15 : vector<1x32xf32>
    %c0_9 = arith.constant 0 : index
    %c0_10 = arith.constant 0 : index
    %c0_11 = arith.constant 0 : index
    %17 = vector.load %arg9[%c0_9, %c0_10, %c0_11] : memref<1x2x32xf32, #tpu.memory_space<vmem>>, vector<1x1x32xf32>
    %18 = vector.shape_cast %17 : vector<1x1x32xf32> to vector<1x32xf32>
    %19 = vector.shape_cast %16 : vector<1x32xf32> to vector<1x1x32xf32>
    tpu.vector_store %arg9[%c0_9, %c0_10, %c0_11], %19 {strides = array<i32>} : memref<1x2x32xf32, #tpu.memory_space<vmem>>, vector<1x1x32xf32>,
    %c0_12 = arith.constant 0 : index
    %c1 = arith.constant 1 : index
    %c0_13 = arith.constant 0 : index
    %20 = vector.load %arg9[%c0_12, %c1, %c0_13] : memref<1x2x32xf32, #tpu.memory_space<vmem>>, vector<1x1x32xf32>
    %21 = vector.shape_cast %20 : vector<1x1x32xf32> to vector<1x32xf32>
    %22 = vector.broadcast %10 : vector<1x8x1xf32> to vector<1x8x32xf32>
    %23 = arith.mulf %0, %22 : vector<1x8x32xf32>
    %cst_14 = arith.constant dense<0.000000e+00> : vector<1x32xf32>
    %24 = vector.multi_reduction <add>, %23, %cst_14 [1] : vector<1x8x32xf32> to vector<1x32xf32>
    %25 = arith.addf %21, %24 : vector<1x32xf32>
    %c0_15 = arith.constant 0 : index
    %c1_16 = arith.constant 1 : index
    %c0_17 = arith.constant 0 : index
    %26 = vector.load %arg9[%c0_15, %c1_16, %c0_17] : memref<1x2x32xf32, #tpu.memory_space<vmem>>, vector<1x1x32xf32>
    %27 = vector.shape_cast %26 : vector<1x1x32xf32> to vector<1x32xf32>
    %28 = vector.shape_cast %25 : vector<1x32xf32> to vector<1x1x32xf32>
    tpu.vector_store %arg9[%c0_15, %c1_16, %c0_17], %28 {strides = array<i32>} : memref<1x2x32xf32, #tpu.memory_space<vmem>>, vector<1x1x32xf32>,
    %c0_i32_18 = arith.constant 0 : i32
    %29 = arith.cmpi eq, %arg1, %c0_i32_18 : i32
    %30 = arith.extui %29 : i1 to i32
    %c0_i32_19 = arith.constant 0 : i32
    %31 = arith.cmpi ne, %30, %c0_i32_19 : i32
    scf.if %31 {
      %c0_20 = arith.constant 0 : index
      %c0_21 = arith.constant 0 : index
      %c0_22 = arith.constant 0 : index
      %32 = vector.load %arg9[%c0_20, %c0_21, %c0_22] : memref<1x2x32xf32, #tpu.memory_space<vmem>>, vector<1x2x32xf32>
      %c0_23 = arith.constant 0 : index
      %c0_24 = arith.constant 0 : index
      %c0_25 = arith.constant 0 : index
      %33 = vector.load %arg4[%c0_23, %c0_24, %c0_25] : memref<1x2x1xf32, #tpu.memory_space<vmem>>, vector<1x2x1xf32>
      %34 = vector.broadcast %33 : vector<1x2x1xf32> to vector<1x2x32xf32>
      %35 = arith.mulf %32, %34 : vector<1x2x32xf32>
      %c0_26 = arith.constant 0 : index
      %c0_27 = arith.constant 0 : index
      %36 = vector.load %arg8[%c0_26, %c0_27] : memref<1x32xf32, #tpu.memory_space<vmem>>, vector<1x32xf32>
      %c0_28 = arith.constant 0 : index
      %c0_29 = arith.constant 0 : index
      %c0_30 = arith.constant 0 : index
      %37 = vector.load %arg7[%c0_28, %c0_29, %c0_30] : memref<1x3x32xf32, #tpu.memory_space<vmem>>, vector<1x1x32xf32>
      %38 = vector.shape_cast %37 : vector<1x1x32xf32> to vector<1x32xf32>
      %39 = vector.shape_cast %36 : vector<1x32xf32> to vector<1x1x32xf32>
      tpu.vector_store %arg7[%c0_28, %c0_29, %c0_30], %39 {strides = array<i32>} : memref<1x3x32xf32, #tpu.memory_space<vmem>>, vector<1x1x32xf32>,
      %40 = vector.extract_strided_slice %35 {offsets = [0, 0, 0], sizes = [1, 1, 32], strides = [1, 1, 1]} : vector<1x2x32xf32> to vector<1x1x32xf32>
      %41 = vector.shape_cast %40 : vector<1x1x32xf32> to vector<1x32xf32>
      %c0_31 = arith.constant 0 : index
      %c1_32 = arith.constant 1 : index
      %c0_33 = arith.constant 0 : index
      %42 = vector.load %arg7[%c0_31, %c1_32, %c0_33] : memref<1x3x32xf32, #tpu.memory_space<vmem>>, vector<1x1x32xf32>
      %43 = vector.shape_cast %42 : vector<1x1x32xf32> to vector<1x32xf32>
      %44 = vector.shape_cast %41 : vector<1x32xf32> to vector<1x1x32xf32>
      tpu.vector_store %arg7[%c0_31, %c1_32, %c0_33], %44 {strides = array<i32>} : memref<1x3x32xf32, #tpu.memory_space<vmem>>, vector<1x1x32xf32>,
      %45 = vector.extract_strided_slice %35 {offsets = [0, 1, 0], sizes = [1, 1, 32], strides = [1, 1, 1]} : vector<1x2x32xf32> to vector<1x1x32xf32>
      %46 = vector.shape_cast %45 : vector<1x1x32xf32> to vector<1x32xf32>
      %c0_34 = arith.constant 0 : index
      %c2 = arith.constant 2 : index
      %c0_35 = arith.constant 0 : index
      %47 = vector.load %arg7[%c0_34, %c2, %c0_35] : memref<1x3x32xf32, #tpu.memory_space<vmem>>, vector<1x1x32xf32>
      %48 = vector.shape_cast %47 : vector<1x1x32xf32> to vector<1x32xf32>
      %49 = vector.shape_cast %46 : vector<1x32xf32> to vector<1x1x32xf32>
      tpu.vector_store %arg7[%c0_34, %c2, %c0_35], %49 {strides = array<i32>} : memref<1x3x32xf32, #tpu.memory_space<vmem>>, vector<1x1x32xf32>,
    } else {
    }
    return
  }
  func.func @transform_0(%arg0: i32, %arg1: i32) -> (i32, i32, i32) {
    %c0_i32 = arith.constant 0 : i32
    %c0_i32_0 = arith.constant 0 : i32
    return %arg0, %arg1, %c0_i32 : i32, i32, i32
  }
  func.func @transform_1(%arg0: i32, %arg1: i32) -> (i32, i32, i32) {
    %c0_i32 = arith.constant 0 : i32
    %c0_i32_0 = arith.constant 0 : i32
    return %arg0, %c0_i32, %arg1 : i32, i32, i32
  }
  func.func @transform_2(%arg0: i32, %arg1: i32) -> (i32, i32, i32) {
    %c0_i32 = arith.constant 0 : i32
    %c0_i32_0 = arith.constant 0 : i32
    %c0_i32_1 = arith.constant 0 : i32
    return %arg0, %c0_i32, %c0_i32_0 : i32, i32, i32
  }
  func.func @transform_3(%arg0: i32, %arg1: i32) -> (i32, i32) {
    %c0_i32 = arith.constant 0 : i32
    %c0_i32_0 = arith.constant 0 : i32
    %c0_i32_1 = arith.constant 0 : i32
    return %c0_i32, %c0_i32_0 : i32, i32
  }
  func.func @transform_4(%arg0: i32, %arg1: i32) -> (i32, i32) {
    %c0_i32 = arith.constant 0 : i32
    %c0_i32_0 = arith.constant 0 : i32
    %c0_i32_1 = arith.constant 0 : i32
    return %c0_i32, %c0_i32_0 : i32, i32
  }
  func.func @transform_5(%arg0: i32, %arg1: i32) -> (i32, i32, i32) {
    %c0_i32 = arith.constant 0 : i32
    %c0_i32_0 = arith.constant 0 : i32
    %c0_i32_1 = arith.constant 0 : i32
    return %arg0, %c0_i32, %c0_i32_0 : i32, i32, i32
  }
}

</mosaic_0001>

<llo_original>
// kernel: three_cat_pool_head.1
$region0: #{three_cat_pool_head.1}
  #allocation0 [shape = 'u32[]', space=smem, size = 0x4, offset = 0x4, fixed_abs, tag = 'smem constant byte address 0x4 - core index']
  #allocation1 [shape = 'u32[72,128]{1,0:T(1,128)}', space=vmem, size = 0x9000, scoped, tag = 'internal scratch']
  #allocation2 [shape = 'f32[1,32]{1,0:T(1,128)}', space=vmem, size = 0x200, scoped, tag = 'scratch operand']
  #allocation3 [shape = 'f32[1,2,32]{2,1,0:T(2,128)}', space=vmem, size = 0x400, scoped, tag = 'scratch operand']
  %s0 = inlined_call_operand.vmem [shape: f32[2,8,32], index: 0, kind: input, shape index: {}]
  %s1 = inlined_call_operand.vmem [shape: f32[2,2,8], index: 1, kind: input, shape index: {}]
  %s2 = inlined_call_operand.vmem [shape: f32[2,2,1], index: 2, kind: input, shape index: {}]
  %s3 = inlined_call_operand.vmem [shape: f32[32,32], index: 3, kind: input, shape index: {}]
  %s4 = inlined_call_operand.vmem [shape: f32[3,32], index: 4, kind: input, shape index: {}]
  %s5 = inlined_call_operand.vmem [shape: f32[2,3,32], index: 5, kind: output, shape index: {}]
  %s6 = sld [smem:[#allocation0]]
  $region61: #{three_cat_pool_head.1} parent=0
    _
  %s8 = ssub.s32 1, %s6
  %s9 = scalar_select 0, %s8, %s6
  loop: start=0, step=1, limit=4
  $region2: #{three_cat_pool_head.1} parent=0 // loop_pre_header
    _
  $region3: #{three_cat_pool_head.1} parent=0 // loop_header
    %s11 = sphi 0, %s15
    %p12 = scmp.ge.s32.totalorder %s11, 4
    %s18 = sphi 0, %s30
    %s19 = sphi 0, %s26
    %s20 = sphi 0, %s18
    %s21 = sphi 0, %s19
    %s22 = sphi 0, %s20
    %s23 = sphi 0, %s21
    %s35 = sphi 0, %s37
    %s38 = sphi 0, %s35
    %s39 = sphi 0, %s38
    %s55 = sphi 0, %s39
    %s63 = sphi 0, %s65
    %s66 = sphi 0, %s63
    %s67 = sphi 0, %s66
    %s83 = sphi 0, %s67
    %s89 = sphi 0, %s91
    %s92 = sphi 0, %s89
    %s93 = sphi 0, %s92
    %s109 = sphi 0, %s93
    %s113 = sphi 0, %s113
    %s115 = sphi 0, %s113
    %s116 = sphi 0, %s115
    %s130 = sphi 0, %s116
    %s134 = sphi 0, %s134
    %s136 = sphi 0, %s134
    %s137 = sphi 0, %s136
    %s151 = sphi 0, %s137
    %s157 = sphi 0, %s159
    %s160 = sphi 0, %s157
    %s161 = sphi 0, %s160
    %s177 = sphi 0, %s161
  $region4: #{three_cat_pool_head.1} parent=0 // loop_header_branch
    %14 = sbr.rel (%p12) target = $region8
  $region5: #{three_cat_pool_head.1} parent=0 // loop_body
    %s16 = ssub.s32 %s11, 1
    %s17 = ssub.s32 %s11, 2
    %s24 = sadd.s32 1, %s19
    %p25 = scmp.ge.s32.totalorder %s24, 1
    %s26 = scalar_select %p25, 0, %s24
    %s27 = sadd.s32 1, %s18
    %s28 = scalar_select %p25, %s27, %s18
    %p29 = scmp.ge.s32.totalorder %s28, 2
    %s30 = scalar_select %p29, 0, %s28
    %s31 = ssub.s32 %s18, %s30
    %s32 = ssub.s32 %s19, %s26
    %s33 = sor.u32 %s31, %s32
    %p34 = scmp.eq.s32.totalorder %s33, 0
    %s36 = sadd.s32 %s35, 1
    %s37 = scalar_select %p34, %s35, %s36
    %p40 = pneg %p34
    %p41 = scmp.eq.s32.totalorder %s11, 1
    %p42 = por %p40, %p41
    %p43 = scmp.ne.s32.totalorder %s35, %s38
    %p44 = scmp.eq.s32.totalorder %s11, 0
    %p45 = por %p43, %p44
    %p46 = scmp.ne.s32.totalorder %s35, %s38
    %p47 = scmp.eq.s32.totalorder %s16, 1
    %p48 = por %p46, %p47
    %p49 = scmp.ne.s32.totalorder %s38, %s39
    %p50 = scmp.eq.s32.totalorder %s16, 0
    %p51 = por %p49, %p50
    %p52 = scmp.ne.s32.totalorder %s38, %s39
    %p53 = scmp.eq.s32.totalorder %s17, 1
    %p54 = por %p52, %p53
    %p56 = scmp.ne.s32.totalorder %s39, %s55
    %p57 = scmp.eq.s32.totalorder %s17, 0
    %p58 = por %p56, %p57
    %s59 = ssub.s32 %s18, %s30
    %s60 = ssub.s32 %s19, %s26
    %s61 = sor.u32 %s59, %s60
    %p62 = scmp.eq.s32.totalorder %s61, 0
    %s64 = sadd.s32 %s63, 1
    %s65 = scalar_select %p62, %s63, %s64
    %p68 = pneg %p62
    %p69 = scmp.eq.s32.totalorder %s11, 1
    %p70 = por %p68, %p69
    %p71 = scmp.ne.s32.totalorder %s63, %s66
    %p72 = scmp.eq.s32.totalorder %s11, 0
    %p73 = por %p71, %p72
    %p74 = scmp.ne.s32.totalorder %s63, %s66
    %p75 = scmp.eq.s32.totalorder %s16, 1
    %p76 = por %p74, %p75
    %p77 = scmp.ne.s32.totalorder %s66, %s67
    %p78 = scmp.eq.s32.totalorder %s16, 0
    %p79 = por %p77, %p78
    %p80 = scmp.ne.s32.totalorder %s66, %s67
    %p81 = scmp.eq.s32.totalorder %s17, 1
    %p82 = por %p80, %p81
    %p84 = scmp.ne.s32.totalorder %s67, %s83
    %p85 = scmp.eq.s32.totalorder %s17, 0
    %p86 = por %p84, %p85
    %s87 = ssub.s32 %s18, %s30
    %p88 = scmp.eq.s32.totalorder %s87, 0
    %s90 = sadd.s32 %s89, 1
    %s91 = scalar_select %p88, %s89, %s90
    %p94 = pneg %p88
    %p95 = scmp.eq.s32.totalorder %s11, 1
    %p96 = por %p94, %p95
    %p97 = scmp.ne.s32.totalorder %s89, %s92
    %p98 = scmp.eq.s32.totalorder %s11, 0
    %p99 = por %p97, %p98
    %p100 = scmp.ne.s32.totalorder %s89, %s92
    %p101 = scmp.eq.s32.totalorder %s16, 1
    %p102 = por %p100, %p101
    %p103 = scmp.ne.s32.totalorder %s92, %s93
    %p104 = scmp.eq.s32.totalorder %s16, 0
    %p105 = por %p103, %p104
    %p106 = scmp.ne.s32.totalorder %s92, %s93
    %p107 = scmp.eq.s32.totalorder %s17, 1
    %p108 = por %p106, %p107
    %p110 = scmp.ne.s32.totalorder %s93, %s109
    %p111 = scmp.eq.s32.totalorder %s17, 0
    %p112 = por %p110, %p111
    %s114 = sadd.s32 %s113, 1
    %p117 = scmp.eq.s32.totalorder %s11, 1
    %p118 = scmp.ne.s32.totalorder %s113, %s115
    %p119 = scmp.eq.s32.totalorder %s11, 0
    %p120 = por %p118, %p119
    %p121 = scmp.ne.s32.totalorder %s113, %s115
    %p122 = scmp.eq.s32.totalorder %s16, 1
    %p123 = por %p121, %p122
    %p124 = scmp.ne.s32.totalorder %s115, %s116
    %p125 = scmp.eq.s32.totalorder %s16, 0
    %p126 = por %p124, %p125
    %p127 = scmp.ne.s32.totalorder %s115, %s116
    %p128 = scmp.eq.s32.totalorder %s17, 1
    %p129 = por %p127, %p128
    %p131 = scmp.ne.s32.totalorder %s116, %s130
    %p132 = scmp.eq.s32.totalorder %s17, 0
    %p133 = por %p131, %p132
    %s135 = sadd.s32 %s134, 1
    %p138 = scmp.eq.s32.totalorder %s11, 1
    %p139 = scmp.ne.s32.totalorder %s134, %s136
    %p140 = scmp.eq.s32.totalorder %s11, 0
    %p141 = por %p139, %p140
    %p142 = scmp.ne.s32.totalorder %s134, %s136
    %p143 = scmp.eq.s32.totalorder %s16, 1
    %p144 = por %p142, %p143
    %p145 = scmp.ne.s32.totalorder %s136, %s137
    %p146 = scmp.eq.s32.totalorder %s16, 0
    %p147 = por %p145, %p146
    %p148 = scmp.ne.s32.totalorder %s136, %s137
    %p149 = scmp.eq.s32.totalorder %s17, 1
    %p150 = por %p148, %p149
    %p152 = scmp.ne.s32.totalorder %s137, %s151
    %p153 = scmp.eq.s32.totalorder %s17, 0
    %p154 = por %p152, %p153
    %s155 = ssub.s32 %s18, %s30
    %p156 = scmp.eq.s32.totalorder %s155, 0
    %s158 = sadd.s32 %s157, 1
    %s159 = scalar_select %p156, %s157, %s158
    %p162 = pneg %p156
    %p163 = scmp.eq.s32.totalorder %s11, 1
    %p164 = por %p162, %p163
    %p165 = scmp.ne.s32.totalorder %s157, %s160
    %p166 = scmp.eq.s32.totalorder %s11, 0
    %p167 = por %p165, %p166
    %p168 = scmp.ne.s32.totalorder %s157, %s160
    %p169 = scmp.eq.s32.totalorder %s16, 1
    %p170 = por %p168, %p169
    %p171 = scmp.ne.s32.totalorder %s160, %s161
    %p172 = scmp.eq.s32.totalorder %s16, 0
    %p173 = por %p171, %p172
    %p174 = scmp.ne.s32.totalorder %s160, %s161
    %p175 = scmp.eq.s32.totalorder %s17, 1
    %p176 = por %p174, %p175
    %p178 = scmp.ne.s32.totalorder %s161, %s177
    %p179 = scmp.eq.s32.totalorder %s17, 0
    %p180 = por %p178, %p179
    %p181 = scmp.le.s32.totalorder 1, %s11
    %p182 = scmp.lt.s32.totalorder %s11, 3
    %p183 = pnand %p181, %p182
    %p184 = pneg %p183
    // Predicated region
    $region9: #{three_cat_pool_head.1} parent=5 // pred_check
      _
    $region10: #{three_cat_pool_head.1} parent=5 // pred_check_branch
      %186 = sbr.rel (%p183) target = $region12
    $region11: #{three_cat_pool_head.1} parent=5 // pred_region
      %s187 = ssub.s32 %s11, 1
      // Predicated region
      $region13: #{three_cat_pool_head.1} parent=11 // pred_check
        %p188 = pneg %p126
      $region14: #{three_cat_pool_head.1} parent=11 // pred_check_branch
        %190 = sbr.rel (%p188) target = $region16
      $region15: #{three_cat_pool_head.1} parent=11 // pred_region
        _
      $region16: #{three_cat_pool_head.1} parent=11 // pred_fallthru
        _
      // Predicated region
      $region17: #{three_cat_pool_head.1} parent=11 // pred_check
        %p191 = pneg %p147
      $region18: #{three_cat_pool_head.1} parent=11 // pred_check_branch
        %193 = sbr.rel (%p191) target = $region20
      $region19: #{three_cat_pool_head.1} parent=11 // pred_region
        _
      $region20: #{three_cat_pool_head.1} parent=11 // pred_fallthru
        _
    $region12: #{three_cat_pool_head.1} parent=5 // pred_fallthru
      _
    %p194 = scmp.lt.s32.totalorder %s11, 2
    // Predicated region
    $region21: #{three_cat_pool_head.1} parent=5 // pred_check
      %p195 = pneg %p194
    $region22: #{three_cat_pool_head.1} parent=5 // pred_check_branch
      %197 = sbr.rel (%p195) target = $region24
    $region23: #{three_cat_pool_head.1} parent=5 // pred_region
      // Predicated region
      $region25: #{three_cat_pool_head.1} parent=23 // pred_check
        %p198 = pneg %p45
      $region26: #{three_cat_pool_head.1} parent=23 // pred_check_branch
        %200 = sbr.rel (%p198) target = $region28
      $region27: #{three_cat_pool_head.1} parent=23 // pred_region
        %p201 = scmp.lt.s32.totalorder %s18, 1
        %s202 = scalar_select %p201, %s18, 1
        %p203 = scmp.lt.s32.totalorder %s19, 0
        %s204 = scalar_select %p203, %s19, 0
        %s205 = sadd.s32 %s204, %s202
        %s206 = smul.addr %s205, 8
        %s207 = scalar_lea.vmem %s0, %s206
      $region28: #{three_cat_pool_head.1} parent=23 // pred_fallthru
        _
      // Predicated region
      $region29: #{three_cat_pool_head.1} parent=23 // pred_check
        %p208 = pneg %p73
      $region30: #{three_cat_pool_head.1} parent=23 // pred_check_branch
        %210 = sbr.rel (%p208) target = $region32
      $region31: #{three_cat_pool_head.1} parent=23 // pred_region
        %p211 = scmp.lt.s32.totalorder %s18, 1
        %s212 = scalar_select %p211, %s18, 1
        %p213 = scmp.lt.s32.totalorder %s19, 0
        %s214 = scalar_select %p213, %s19, 0
        %s215 = sadd.s32 %s214, %s212
        %s216 = smul.addr %s215, 2
        %s217 = scalar_lea.vmem %s1, %s216
      $region32: #{three_cat_pool_head.1} parent=23 // pred_fallthru
        _
      // Predicated region
      $region33: #{three_cat_pool_head.1} parent=23 // pred_check
        %p218 = pneg %p99
      $region34: #{three_cat_pool_head.1} parent=23 // pred_check_branch
        %220 = sbr.rel (%p218) target = $region36
      $region35: #{three_cat_pool_head.1} parent=23 // pred_region
        %p221 = scmp.lt.s32.totalorder %s18, 1
        %s222 = scalar_select %p221, %s18, 1
        %s223 = smul.addr %s222, 2
        %s224 = scalar_lea.vmem %s2, %s223
      $region36: #{three_cat_pool_head.1} parent=23 // pred_fallthru
        _
    $region24: #{three_cat_pool_head.1} parent=5 // pred_fallthru
      _
    %p225 = scmp.le.s32.totalorder 1, %s11
    %p226 = scmp.lt.s32.totalorder %s11, 3
    %p227 = pnand %p225, %p226
    %p228 = pneg %p227
    // Predicated region
    $region37: #{three_cat_pool_head.1} parent=5 // pred_check
      _
    $region38: #{three_cat_pool_head.1} parent=5 // pred_check_branch
      %230 = sbr.rel (%p227) target = $region40
    $region39: #{three_cat_pool_head.1} parent=5 // pred_region
      %s231 = ssub.s32 %s11, 1
      %p232 = scmp.lt.s32.totalorder %s20, 1
      %s233 = scalar_select %p232, %s20, 1
      %p234 = scmp.lt.s32.totalorder %s21, 0
      %s235 = scalar_select %p234, %s21, 0
      %s236 = sadd.s32 %s235, %s233
      %s237 = smul.addr %s236, 8
      %s238 = scalar_lea.vmem %s0, %s237
      %p239 = pneg %p51
      %p240 = pneg %p48
      %p241 = scmp.lt.s32.totalorder %s20, 1
      %s242 = scalar_select %p241, %s20, 1
      %p243 = scmp.lt.s32.totalorder %s21, 0
      %s244 = scalar_select %p243, %s21, 0
      %s245 = sadd.s32 %s244, %s242
      %s246 = smul.addr %s245, 2
      %s247 = scalar_lea.vmem %s1, %s246
      %p248 = pneg %p79
      %p249 = pneg %p76
      %p250 = scmp.lt.s32.totalorder %s20, 1
      %s251 = scalar_select %p250, %s20, 1
      %s252 = smul.addr %s251, 2
      %s253 = scalar_lea.vmem %s2, %s252
      %p254 = pneg %p105
      %p255 = pneg %p102
      %p256 = pneg %p126
      %p257 = pneg %p123
      %p258 = pneg %p147
      %p259 = pneg %p144
      %p260 = pneg %p173
      %p261 = pneg %p170
      %p262 = scmp.lt.s32.totalorder %s20, 1
      %s263 = scalar_select %p262, %s20, 1
      %s264 = smul.addr %s263, 4
      %s265 = scalar_lea.vmem %s5, %s264
      %p266 = scmp.lt.s32.totalorder %s20, 1
      %s267 = scalar_select %p266, %s20, 1
      %p268 = scmp.lt.s32.totalorder %s21, 0
      %s269 = scalar_select %p268, %s21, 0
      %s270 = sadd.s32 %s269, %s267
      %s271 = smul.addr %s270, 8
      %s272 = scalar_lea.vmem %s0, %s271
      %p273 = scmp.lt.s32.totalorder %s20, 1
      %s274 = scalar_select %p273, %s20, 1
      %p275 = scmp.lt.s32.totalorder %s21, 0
      %s276 = scalar_select %p275, %s21, 0
      %s277 = sadd.s32 %s276, %s274
      %s278 = smul.addr %s277, 2
      %s279 = scalar_lea.vmem %s1, %s278
      %p280 = scmp.lt.s32.totalorder %s20, 1
      %s281 = scalar_select %p280, %s20, 1
      %s282 = smul.addr %s281, 2
      %s283 = scalar_lea.vmem %s2, %s282
      %p284 = scmp.lt.s32.totalorder %s20, 1
      %s285 = scalar_select %p284, %s20, 1
      %s286 = smul.addr %s285, 4
      %s287 = scalar_lea.vmem %s5, %s286
      %v288 = vld [vmem:[%s272] sm:$0xff]
      %v289 = vld [vmem:[%s279] sm:$0x3]
      %p290 = scmp.eq.s32.totalorder %s21, 0
      // Predicated region
      $region41: #{three_cat_pool_head.1} parent=39 // pred_check
        %p291 = pneg %p290
      $region42: #{three_cat_pool_head.1} parent=39 // pred_check_branch
        %293 = sbr.rel (%p291) target = $region44
      $region43: #{three_cat_pool_head.1} parent=39 // pred_region
        %v294 = vld [vmem:[%s4] sm:$0x7]
        %v295 = vld [vmem:[%s3] sm:$0xff]
        %v296 = vld [vmem:[%s3 + $0x8] sm:$0xff]
        %v297 = vld [vmem:[%s3 + $0x10] sm:$0xff]
        %v298 = vld [vmem:[%s3 + $0x18] sm:$0xff]
        %vm299 = vcmask 261120
        %v301 = vsel %vm299, %v288, 0
        %303 = vmatpush.msra.mxu0 0.0
        %304 = vmatpush.msra.mxu0 0.0
        %305 = vmatpush.msra.mxu0 0.0
        %306 = vmatpush.msra.mxu0 0.0
        %307 = vmatpush.msra.mxu0 0.0
        %308 = vmatpush.msra.mxu0 0.0
        %309 = vmatpush.msra.mxu0 0.0
        %310 = vmatpush.msra.mxu0 0.0
        %311 = vmatpush.msra.mxu0 0.0
        %312 = vmatpush.msra.mxu0 0.0
        %313 = vmatpush.msra.mxu0 0.0
        %314 = vmatpush.msra.mxu0 0.0
        %315 = vmatpush.msra.mxu0 %v298
        %316 = vmatpush.msra.mxu0 %v297
        %317 = vmatpush.msra.mxu0 %v296
        %318 = vmatpush.msra.mxu0 %v295
        %319 = vmatmul.f32.gmra.mxu0 %v301
        %v320 = vpop.f32.mrf.mxu0
        %v321 = vadd.f32 %v294, %v320
        %322 = vdwg.mxu0
        %vm323 = vcmask 253952
        %v324 = vsel %vm323, %v321, 0.0
        %325 = vadd.xlane.f32.xlu0 %v324
        %v326 = vpop.xlane.xlu0 %325
        %v327 = vrcp.pop 32.0
        %v328 = vmul.f32 32.0, %v327
        %v329 = vsub.f32 1.0, %v328
        %v330 = vmul.f32 %v327, %v329
        %v331 = vadd.f32 %v327, %v330
        %vm332 = vweird.f32 %v327
        %v333 = vsel %vm332, %v327, %v331
        %v334 = vmul.f32 %v326, %v333
        %v335 = vsub.f32 %v321, %v334
        %v336 = vmul.f32 %v335, %v335
        %v337 = vsel %vm323, %v336, 0.0
        %338 = vadd.xlane.f32.xlu0 %v337
        %v339 = vpop.xlane.xlu0 %338
        %v340 = vmul.f32 %v339, %v333
        %v341 = vadd.f32 %v340, 1e-12
        %v342 = vrsqrt.pop %v341
        %v343 = vmul.f32 %v342, %v341
        %v344 = vmul.f32 %v343, %v342
        %v345 = vmul.f32 0.5, %v344
        %v346 = vsub.f32 1.5, %v345
        %v347 = vmul.f32 %v342, %v346
        %vm348 = vweird.f32 %v341
        %vm349 = vweird.f32 %v342
        %vm350 = vmor %vm348, %vm349
        %v351 = vsel %vm350, %v342, %v347
        %v352 = vmul.f32 %v335, %v351
        %v354 = vrot.slane %v294, 1
        %v356 = vmul.f32 %v352, %v354
        %v357 = vrot.slane %v294, 2
        %v359 = vadd.f32 %v356, %v357
        %360 = vst.msk [vmem:[#allocation2] sm:$0x1] %vm323, %v359
        %vm361 = vcmask 254976
        %362 = vst.msk [vmem:[#allocation3] sm:$0x3] %vm361, 0.0
      $region44: #{three_cat_pool_head.1} parent=39 // pred_fallthru
        _
      %v363 = vperm.slane %v289, 0
      %v364 = vlaneseq
      %v365 = vshrl.u32 %v364, 7
      %367 = vset.pattern.permute.xlu0 %v365
      %368 = vperm.xlu0 %367, %v363
      %v369 = vpop.permute.xlu0 %368
      %v370 = vperm.slane %v289, 1
      %v371 = vlaneseq
      %v372 = vshrl.u32 %v371, 7
      %374 = vset.pattern.permute.xlu0 %v372
      %375 = vperm.xlu0 %374, %v370
      %v376 = vpop.permute.xlu0 %375
      %v377 = vld [vmem:[#allocation3] sm:$0x1]
      %v378 = vmul.f32 %v288, %v369
      %vm379 = vcmask 261120
      %v380 = vsel %vm379, %v378, 0.0
      %v381 = vrot.slane %v380, 4
      %v382 = vadd.f32 %v380, %v381
      %v383 = vrot.slane %v382, 2
      %v384 = vadd.f32 %v382, %v383
      %v385 = vrot.slane %v384, 1
      %v386 = vadd.f32 %v384, %v385
      %v387 = vadd.f32 %v377, %v386
      %vm388 = vcmask 253952
      %389 = vst.msk [vmem:[#allocation3] sm:$0x1] %vm388, %v387
      %v390 = vld [vmem:[#allocation3 + $0x1] sm:$0x1]
      %v391 = vmul.f32 %v288, %v376
      %v392 = vsel %vm379, %v391, 0.0
      %v393 = vrot.slane %v392, 4
      %v394 = vadd.f32 %v392, %v393
      %v395 = vrot.slane %v394, 2
      %v396 = vadd.f32 %v394, %v395
      %v397 = vrot.slane %v396, 1
      %v398 = vadd.f32 %v396, %v397
      %v399 = vadd.f32 %v390, %v398
      %400 = vst.msk [vmem:[#allocation3 + $0x1] sm:$0x1] %vm388, %v399
      // Predicated region
      $region45: #{three_cat_pool_head.1} parent=39 // pred_check
        %p401 = pneg %p290
      $region46: #{three_cat_pool_head.1} parent=39 // pred_check_branch
        %403 = sbr.rel (%p401) target = $region48
      $region47: #{three_cat_pool_head.1} parent=39 // pred_region
        %v404 = vld [vmem:[#allocation3] sm:$0x3]
        %v405 = vld [vmem:[%s283] sm:$0x3]
        %407 = vset.pattern.permute.xlu0 0
        %408 = vperm.xlu0 %407, %v405
        %v409 = vpop.permute.xlu0 %408
        %v411 = vmul.f32 %v404, %v409
        %v412 = vld [vmem:[#allocation2] sm:$0x1]
        %413 = vst.msk [vmem:[%s287] sm:$0x1] %vm388, %v412
        %414 = vst.msk [vmem:[%s287 + $0x1] sm:$0x1] %vm388, %v411
        %vm415 = vcmask 254977
        %416 = vst.msk [vmem:[%s287 + $0x1] sm:$0x2] %vm415, %v411
      $region48: #{three_cat_pool_head.1} parent=39 // pred_fallthru
        _
      %p417 = scmp.lt.s32.totalorder %s20, 1
      %s418 = scalar_select %p417, %s20, 1
      %s419 = smul.addr %s418, 4
      %s420 = scalar_lea.vmem %s5, %s419
      // Predicated region
      $region49: #{three_cat_pool_head.1} parent=39 // pred_check
        %p421 = pneg %p170
      $region50: #{three_cat_pool_head.1} parent=39 // pred_check_branch
        %423 = sbr.rel (%p421) target = $region52
      $region51: #{three_cat_pool_head.1} parent=39 // pred_region
        _
      $region52: #{three_cat_pool_head.1} parent=39 // pred_fallthru
        _
    $region40: #{three_cat_pool_head.1} parent=5 // pred_fallthru
      _
    %p424 = scmp.le.s32.totalorder 2, %s11
    // Predicated region
    $region53: #{three_cat_pool_head.1} parent=5 // pred_check
      %p425 = pneg %p424
    $region54: #{three_cat_pool_head.1} parent=5 // pred_check_branch
      %427 = sbr.rel (%p425) target = $region56
    $region55: #{three_cat_pool_head.1} parent=5 // pred_region
      %s428 = ssub.s32 %s11, 2
      // Predicated region
      $region57: #{three_cat_pool_head.1} parent=55 // pred_check
        %p429 = pneg %p176
      $region58: #{three_cat_pool_head.1} parent=55 // pred_check_branch
        %431 = sbr.rel (%p429) target = $region60
      $region59: #{three_cat_pool_head.1} parent=55 // pred_region
        %p432 = scmp.lt.s32.totalorder %s22, 1
        %s433 = scalar_select %p432, %s22, 1
        %s434 = smul.addr %s433, 4
        %s435 = scalar_lea.vmem %s5, %s434
      $region60: #{three_cat_pool_head.1} parent=55 // pred_fallthru
        _
    $region56: #{three_cat_pool_head.1} parent=5 // pred_fallthru
      _
  $region6: #{three_cat_pool_head.1} parent=0 // loop_footer
    %s15 = sadd.s32 1, %s11
  $region7: #{three_cat_pool_head.1} parent=0 // loop_footer_branch
    %10 = sbr.rel target = $region3
  $region8: #{three_cat_pool_head.1} parent=0 // loop_exit
    _

</llo_original>
